<compile_context>
chip_gen: v5e
topology: v5e:2x2
jax: 0.10.0
libtpu: 0.0.40
codegen_flags: <defaults>
</compile_context>

<pallas_src>
import functools
import math

import jax
import jax.numpy as jnp
from jax import lax
from jax.experimental import pallas as pl
from jax.experimental.pallas import tpu as pltpu


def _round_up(x, m):
    return ((x + m - 1) // m) * m


def _label_smoothing_kernel(pred_ref, tgt_ref, loss_out_ref, cnt_out_ref,
                            loss_acc_ref, cnt_acc_ref,
                            *, confidence, sv, c0, sv_log_sv,
                            ignore_index, ignore_col):
    i = pl.program_id(1)

    # Reset the per-core accumulators at the start of each core's row loop.
    @pl.when(i == 0)
    def _():
        loss_acc_ref[...] = jnp.zeros_like(loss_acc_ref)
        cnt_acc_ref[...] = jnp.zeros_like(cnt_acc_ref)

    x = pred_ref[...].astype(jnp.float32)   # (TN, V) logits (upcast in-kernel; input may be bf16)
    tgt = tgt_ref[...]                       # (TN, 1) int32
    tn, v = x.shape

    # log_softmax over the vocab (lane) axis.
    m = jnp.max(x, axis=-1, keepdims=True)
    lse = m + jnp.log(jnp.sum(jnp.exp(x - m), axis=-1, keepdims=True))
    logp = x - lse                           # (TN, V)

    col = lax.broadcasted_iota(jnp.int32, (tn, v), 1)
    mask_t = col == tgt                      # target column (scatter position)
    mask_ig = col == ignore_col              # column zeroed in one_hot (python neg. index)

    # logp gathered at the target column, and summed over all "smoothing" columns.
    lp_t = jnp.sum(jnp.where(mask_t, logp, 0.0), axis=-1, keepdims=True)          # (TN, 1)
    r = jnp.sum(jnp.where(mask_t | mask_ig, 0.0, logp), axis=-1, keepdims=True)   # (TN, 1)

    # Closed form of sum_v p_v*(log p_v - logp_v) with p in {confidence, sv, 0}:
    #   normal row:          c0 - confidence*lp_t - sv*(S - lp_t - lp_ig)
    #   row with tgt==ig_col: + sv*log(sv) extra constant (one more sv column)
    # where c0 = confidence*log(confidence) + label_smooth*log(sv) is compile-time.
    tgt_is_ig = tgt == ignore_col
    valid = tgt != ignore_index

    row_loss = c0 - confidence * lp_t - sv * r + jnp.where(tgt_is_ig, sv_log_sv, 0.0)
    row_loss = jnp.where(valid, row_loss, 0.0)   # masked_fill_ on ignored / padded rows

    loss_acc_ref[...] += row_loss
    cnt_acc_ref[...] += valid.astype(jnp.float32)

    # Cross-lane reduce + store only once per core, off the steady-state loop.
    @pl.when(i == pl.num_programs(1) - 1)
    def _():
        loss_out_ref[...] = jnp.full(loss_out_ref.shape, jnp.sum(loss_acc_ref[...]),
                                     dtype=jnp.float32)
        cnt_out_ref[...] = jnp.full(cnt_out_ref.shape, jnp.sum(cnt_acc_ref[...]),
                                    dtype=jnp.float32)


def label_smoothing_loss(pred, target, *, label_smooth, tgt_vocab_size,
                         ignore_index=-100, tile_n=None, n_cores=2):
    """Pallas equivalent of LabelSmoothingLoss.forward(pred, target)."""
    assert 0.0 < label_smooth <= 1.0
    B, S, V = pred.shape
    assert V == tgt_vocab_size and V > 2
    N = B * S

    confidence = 1.0 - label_smooth
    sv = label_smooth / (tgt_vocab_size - 2)
    # torch one_hot[ignore_index] = 0 uses python negative indexing on the vocab axis.
    ignore_col = ignore_index if ignore_index >= 0 else tgt_vocab_size + ignore_index
    assert 0 <= ignore_col < tgt_vocab_size

    log_sv = math.log(sv)
    c0 = (confidence * math.log(confidence) if confidence > 0.0 else 0.0) \
        + label_smooth * log_sv
    sv_log_sv = sv * log_sv

    # ---- tile selection: ~2 MiB of f32 work per pred block, sublane-aligned per dtype ----
    itemsize = jnp.dtype(pred.dtype).itemsize
    sublane = {4: 8, 2: 16, 1: 32}.get(itemsize, 8)
    if tile_n is None:
        tile_n = max(sublane, ((2 * 1024 * 1024) // (V * 4)) // sublane * sublane)
        tile_n = min(tile_n, _round_up(max(1, -(-N // n_cores)), sublane))
        tile_n = min(tile_n, 4096)

    chunks_total = -(-N // tile_n)
    cpc = -(-chunks_total // n_cores)          # chunks per core
    n_pad = n_cores * cpc * tile_n
    last_chunk = chunks_total - 1

    pred2 = pred.reshape(N, V)                 # no dtype cast in the wrapper: keep HBM bytes minimal
    tgt2 = target.reshape(N).astype(jnp.int32)
    if n_pad != N:                             # pad targets only (cheap); padded rows are masked
        tgt2 = jnp.pad(tgt2, (0, n_pad - N), constant_values=ignore_index)
    tgt2 = tgt2.reshape(n_pad, 1)

    kernel = functools.partial(
        _label_smoothing_kernel,
        confidence=confidence, sv=sv, c0=c0, sv_log_sv=sv_log_sv,
        ignore_index=ignore_index, ignore_col=ignore_col)

    def pred_map(c, i):
        # Clamp so grid chunks past the real data re-read the last real chunk; their
        # targets are padded to ignore_index so they contribute nothing.
        return (jnp.minimum(c * cpc + i, last_chunk), 0)

    def tgt_map(c, i):
        return (c * cpc + i, 0)

    loss_parts, cnt_parts = pl.pallas_call(
        kernel,
        out_shape=(jax.ShapeDtypeStruct((n_cores, 8, 128), jnp.float32),
                   jax.ShapeDtypeStruct((n_cores, 8, 128), jnp.float32)),
        grid_spec=pltpu.PrefetchScalarGridSpec(
            num_scalar_prefetch=0,
            grid=(n_cores, cpc),
            in_specs=[
                pl.BlockSpec((tile_n, V), pred_map),
                pl.BlockSpec((tile_n, 1), tgt_map),
            ],
            out_specs=(
                pl.BlockSpec((1, 8, 128), lambda c, i: (c, 0, 0)),
                pl.BlockSpec((1, 8, 128), lambda c, i: (c, 0, 0)),
            ),
            scratch_shapes=[pltpu.VMEM((tile_n, 1), jnp.float32),
                            pltpu.VMEM((tile_n, 1), jnp.float32)],
        ),
        compiler_params=pltpu.CompilerParams(
            dimension_semantics=("parallel", "arbitrary"),
            vmem_limit_bytes=48 * 1024 * 1024,
        ),
    )(pred2, tgt2)

    # TODO(synk): returns NaN (0/0) if every target is ignore_index, same as the torch module.
    return jnp.sum(loss_parts[:, 0, 0]) / jnp.sum(cnt_parts[:, 0, 0])


def _reference_loss(pred, target, *, label_smooth, tgt_vocab_size, ignore_index=-100):
    """Pure-JAX reference mirroring the torch forward, for verification."""
    V = tgt_vocab_size
    smoothing_value = label_smooth / (V - 2)
    confidence = 1.0 - label_smooth
    one_hot = jnp.full((V,), smoothing_value, jnp.float32).at[ignore_index].set(0.0)
    B, S = target.shape
    model_prob = jnp.broadcast_to(one_hot, (B, S, V))
    col = lax.broadcasted_iota(jnp.int32, (B, S, V), 2)
    model_prob = jnp.where(col == target[..., None], confidence, model_prob)
    model_prob = jnp.where((target == ignore_index)[..., None], 0.0, model_prob)
    logp = jax.nn.log_softmax(pred.astype(jnp.float32), axis=2)
    safe_p = jnp.where(model_prob > 0.0, model_prob, 1.0)
    kl = jnp.where(model_prob > 0.0, model_prob * (jnp.log(safe_p) - logp), 0.0)
    loss = jnp.sum(kl, axis=2)
    loss = jnp.where(target == ignore_index, 0.0, loss)
    return jnp.sum(loss) / jnp.sum((target != ignore_index).astype(jnp.float32))


if __name__ == "__main__":
    B, S, V = 2, 8, 128
    label_smooth = 0.1
    ignore_index = -100

    key = jax.random.PRNGKey(0)
    k_pred, k_tgt = jax.random.split(key)
    pred = jax.random.normal(k_pred, (B, S, V), dtype=jnp.float32)
    target = jax.random.randint(k_tgt, (B, S), 1, V, dtype=jnp.int32)
    # Mark a few positions as ignored.
    target = target.at[0, 0].set(ignore_index).at[1, 5].set(ignore_index)

    out = label_smoothing_loss(pred, target,
                               label_smooth=label_smooth,
                               tgt_vocab_size=V,
                               ignore_index=ignore_index)
    out = jax.block_until_ready(out)

    ref = _reference_loss(pred, target,
                          label_smooth=label_smooth,
                          tgt_vocab_size=V,
                          ignore_index=ignore_index)
    assert jnp.allclose(out, ref, rtol=1e-4, atol=1e-5), (out, ref)

    # bf16 logits pass straight through (halves HBM traffic); upcast happens in-kernel.
    out_bf16 = label_smoothing_loss(pred.astype(jnp.bfloat16), target,
                                    label_smooth=label_smooth,
                                    tgt_vocab_size=V,
                                    ignore_index=ignore_index)
    out_bf16 = jax.block_until_ready(out_bf16)
    assert bool(jnp.isfinite(out_bf16)) and abs(float(out_bf16) - float(ref)) < 5e-2, (out_bf16, ref)

    print("KERNEL_OK")
</pallas_src>

<mosaic_0001>
module attributes {stable_mosaic.version = 11 : i64} {
  func.func @_label_smoothing_kernel(%arg0: i32, %arg1: i32, %arg2: memref<8x128xf32, #tpu.memory_space<vmem>>, %arg3: memref<8x1xi32, #tpu.memory_space<vmem>>, %arg4: memref<1x8x128xf32, #tpu.memory_space<vmem>>, %arg5: memref<1x8x128xf32, #tpu.memory_space<vmem>>, %arg6: memref<8x1xf32, #tpu.memory_space<vmem>>, %arg7: memref<8x1xf32, #tpu.memory_space<vmem>>) attributes {dimension_semantics = [#tpu.dimension_semantics<parallel>, #tpu.dimension_semantics<arbitrary>], iteration_bounds = array<i64: 2, 1>, scalar_prefetch = 0 : i64, scratch_operands = 2 : i64, tpu.core_type = #tpu.core_type<tc>, window_params = [{transform_indices = @transform_0, window_bounds = array<i64: 8, 128>}, {transform_indices = @transform_1, window_bounds = array<i64: 8, 1>}, {transform_indices = @transform_2, window_bounds = array<i64: 1, 8, 128>}, {transform_indices = @transform_3, window_bounds = array<i64: 1, 8, 128>}]} {
    %c0_i32 = arith.constant 0 : i32
    %0 = arith.cmpi eq, %arg1, %c0_i32 : i32
    %1 = arith.extui %0 : i1 to i32
    %c0_i32_0 = arith.constant 0 : i32
    %2 = arith.cmpi ne, %1, %c0_i32_0 : i32
    scf.if %2 {
      %cst_26 = arith.constant 0.000000e+00 : f32
      %58 = vector.broadcast %cst_26 : f32 to vector<8x1xf32>
      %c0_27 = arith.constant 0 : index
      %c0_28 = arith.constant 0 : index
      %59 = vector.load %arg6[%c0_27, %c0_28] : memref<8x1xf32, #tpu.memory_space<vmem>>, vector<8x1xf32>
      tpu.vector_store %arg6[%c0_27, %c0_28], %58 {strides = array<i32>} : memref<8x1xf32, #tpu.memory_space<vmem>>, vector<8x1xf32>,
      %cst_29 = arith.constant 0.000000e+00 : f32
      %60 = vector.broadcast %cst_29 : f32 to vector<8x1xf32>
      %c0_30 = arith.constant 0 : index
      %c0_31 = arith.constant 0 : index
      %61 = vector.load %arg7[%c0_30, %c0_31] : memref<8x1xf32, #tpu.memory_space<vmem>>, vector<8x1xf32>
      tpu.vector_store %arg7[%c0_30, %c0_31], %60 {strides = array<i32>} : memref<8x1xf32, #tpu.memory_space<vmem>>, vector<8x1xf32>,
    } else {
    }
    %c0 = arith.constant 0 : index
    %c0_1 = arith.constant 0 : index
    %3 = vector.load %arg2[%c0, %c0_1] : memref<8x128xf32, #tpu.memory_space<vmem>>, vector<8x128xf32>
    %c0_2 = arith.constant 0 : index
    %c0_3 = arith.constant 0 : index
    %4 = vector.load %arg3[%c0_2, %c0_3] : memref<8x1xi32, #tpu.memory_space<vmem>>, vector<8x1xi32>
    %cst = arith.constant dense<0xFF800000> : vector<8xf32>
    %5 = vector.multi_reduction <maximumf>, %3, %cst [1] : vector<8x128xf32> to vector<8xf32>
    %6 = vector.shape_cast %5 : vector<8xf32> to vector<8x1xf32>
    %7 = vector.broadcast %6 : vector<8x1xf32> to vector<8x128xf32>
    %8 = arith.subf %3, %7 : vector<8x128xf32>
    %9 = math.exp %8 : vector<8x128xf32>
    %cst_4 = arith.constant dense<0.000000e+00> : vector<8xf32>
    %10 = vector.multi_reduction <add>, %9, %cst_4 [1] : vector<8x128xf32> to vector<8xf32>
    %11 = vector.shape_cast %10 : vector<8xf32> to vector<8x1xf32>
    %12 = math.log %11 : vector<8x1xf32>
    %13 = arith.addf %6, %12 : vector<8x1xf32>
    %14 = vector.broadcast %13 : vector<8x1xf32> to vector<8x128xf32>
    %15 = arith.subf %3, %14 : vector<8x128xf32>
    %16 = tpu.iota {dimensions = array<i32: 1>} : vector<8x128xi32>
    %17 = vector.broadcast %4 : vector<8x1xi32> to vector<8x128xi32>
    %18 = arith.cmpi eq, %16, %17 : vector<8x128xi32>
    %c28_i32 = arith.constant 28 : i32
    %19 = vector.broadcast %c28_i32 : i32 to vector<8x128xi32>
    %20 = arith.cmpi eq, %16, %19 : vector<8x128xi32>
    %cst_5 = arith.constant 0.000000e+00 : f32
    %21 = vector.broadcast %cst_5 : f32 to vector<8x128xf32>
    %22 = arith.select %18, %15, %21 : vector<8x128xi1>, vector<8x128xf32>
    %cst_6 = arith.constant dense<0.000000e+00> : vector<8xf32>
    %23 = vector.multi_reduction <add>, %22, %cst_6 [1] : vector<8x128xf32> to vector<8xf32>
    %24 = vector.shape_cast %23 : vector<8xf32> to vector<8x1xf32>
    %25 = arith.ori %18, %20 : vector<8x128xi1>
    %cst_7 = arith.constant 0.000000e+00 : f32
    %26 = vector.broadcast %cst_7 : f32 to vector<8x128xf32>
    %27 = arith.select %25, %26, %15 : vector<8x128xi1>, vector<8x128xf32>
    %cst_8 = arith.constant dense<0.000000e+00> : vector<8xf32>
    %28 = vector.multi_reduction <add>, %27, %cst_8 [1] : vector<8x128xf32> to vector<8xf32>
    %29 = vector.shape_cast %28 : vector<8xf32> to vector<8x1xf32>
    %c28_i32_9 = arith.constant 28 : i32
    %30 = vector.broadcast %c28_i32_9 : i32 to vector<8x1xi32>
    %31 = arith.cmpi eq, %4, %30 : vector<8x1xi32>
    %c-100_i32 = arith.constant -100 : i32
    %32 = vector.broadcast %c-100_i32 : i32 to vector<8x1xi32>
    %33 = arith.cmpi ne, %4, %32 : vector<8x1xi32>
    %cst_10 = arith.constant 0.899999976 : f32
    %34 = vector.broadcast %cst_10 : f32 to vector<8x1xf32>
    %35 = arith.mulf %34, %24 : vector<8x1xf32>
    %cst_11 = arith.constant -0.808711171 : f32
    %36 = vector.broadcast %cst_11 : f32 to vector<8x1xf32>
    %37 = arith.subf %36, %35 : vector<8x1xf32>
    %cst_12 = arith.constant 7.93650805E-4 : f32
    %38 = vector.broadcast %cst_12 : f32 to vector<8x1xf32>
    %39 = arith.mulf %38, %29 : vector<8x1xf32>
    %40 = arith.subf %37, %39 : vector<8x1xf32>
    %cst_13 = arith.constant -0.00566576747 : f32
    %cst_14 = arith.constant 0.000000e+00 : f32
    %41 = vector.broadcast %cst_13 : f32 to vector<8x1xf32>
    %42 = vector.broadcast %cst_14 : f32 to vector<8x1xf32>
    %43 = arith.select %31, %41, %42 : vector<8x1xi1>, vector<8x1xf32>
    %44 = arith.addf %40, %43 : vector<8x1xf32>
    %cst_15 = arith.constant 0.000000e+00 : f32
    %45 = vector.broadcast %cst_15 : f32 to vector<8x1xf32>
    %46 = arith.select %33, %44, %45 : vector<8x1xi1>, vector<8x1xf32>
    %c0_16 = arith.constant 0 : index
    %c0_17 = arith.constant 0 : index
    %47 = vector.load %arg6[%c0_16, %c0_17] : memref<8x1xf32, #tpu.memory_space<vmem>>, vector<8x1xf32>
    %48 = arith.addf %47, %46 : vector<8x1xf32>
    %c0_18 = arith.constant 0 : index
    %c0_19 = arith.constant 0 : index
    %49 = vector.load %arg6[%c0_18, %c0_19] : memref<8x1xf32, #tpu.memory_space<vmem>>, vector<8x1xf32>
    tpu.vector_store %arg6[%c0_18, %c0_19], %48 {strides = array<i32>} : memref<8x1xf32, #tpu.memory_space<vmem>>, vector<8x1xf32>,
    %c0_20 = arith.constant 0 : index
    %c0_21 = arith.constant 0 : index
    %50 = vector.load %arg7[%c0_20, %c0_21] : memref<8x1xf32, #tpu.memory_space<vmem>>, vector<8x1xf32>
    %51 = arith.extui %33 : vector<8x1xi1> to vector<8x1xi32>
    %52 = arith.sitofp %51 : vector<8x1xi32> to vector<8x1xf32>
    %53 = arith.addf %50, %52 : vector<8x1xf32>
    %c0_22 = arith.constant 0 : index
    %c0_23 = arith.constant 0 : index
    %54 = vector.load %arg7[%c0_22, %c0_23] : memref<8x1xf32, #tpu.memory_space<vmem>>, vector<8x1xf32>
    tpu.vector_store %arg7[%c0_22, %c0_23], %53 {strides = array<i32>} : memref<8x1xf32, #tpu.memory_space<vmem>>, vector<8x1xf32>,
    %c0_i32_24 = arith.constant 0 : i32
    %55 = arith.cmpi eq, %arg1, %c0_i32_24 : i32
    %56 = arith.extui %55 : i1 to i32
    %c0_i32_25 = arith.constant 0 : i32
    %57 = arith.cmpi ne, %56, %c0_i32_25 : i32
    scf.if %57 {
      %c0_26 = arith.constant 0 : index
      %c0_27 = arith.constant 0 : index
      %58 = vector.load %arg6[%c0_26, %c0_27] : memref<8x1xf32, #tpu.memory_space<vmem>>, vector<8x1xf32>
      %59 = vector.shape_cast %58 : vector<8x1xf32> to vector<1x8x1xf32>
      %cst_28 = arith.constant dense<0.000000e+00> : vector<1xf32>
      %60 = vector.multi_reduction <add>, %59, %cst_28 [1, 2] : vector<1x8x1xf32> to vector<1xf32>
      %61 = vector.shape_cast %60 : vector<1xf32> to vector<1x1x1xf32>
      %62 = vector.extract %61[0, 0, 0] : f32 from vector<1x1x1xf32>
      %63 = vector.broadcast %62 : f32 to vector<1x8x128xf32>
      %c0_29 = arith.constant 0 : index
      %c0_30 = arith.constant 0 : index
      %c0_31 = arith.constant 0 : index
      %64 = vector.load %arg4[%c0_29, %c0_30, %c0_31] : memref<1x8x128xf32, #tpu.memory_space<vmem>>, vector<1x8x128xf32>
      tpu.vector_store %arg4[%c0_29, %c0_30, %c0_31], %63 {strides = array<i32>} : memref<1x8x128xf32, #tpu.memory_space<vmem>>, vector<1x8x128xf32>,
      %c0_32 = arith.constant 0 : index
      %c0_33 = arith.constant 0 : index
      %65 = vector.load %arg7[%c0_32, %c0_33] : memref<8x1xf32, #tpu.memory_space<vmem>>, vector<8x1xf32>
      %66 = vector.shape_cast %65 : vector<8x1xf32> to vector<1x8x1xf32>
      %cst_34 = arith.constant dense<0.000000e+00> : vector<1xf32>
      %67 = vector.multi_reduction <add>, %66, %cst_34 [1, 2] : vector<1x8x1xf32> to vector<1xf32>
      %68 = vector.shape_cast %67 : vector<1xf32> to vector<1x1x1xf32>
      %69 = vector.extract %68[0, 0, 0] : f32 from vector<1x1x1xf32>
      %70 = vector.broadcast %69 : f32 to vector<1x8x128xf32>
      %c0_35 = arith.constant 0 : index
      %c0_36 = arith.constant 0 : index
      %c0_37 = arith.constant 0 : index
      %71 = vector.load %arg5[%c0_35, %c0_36, %c0_37] : memref<1x8x128xf32, #tpu.memory_space<vmem>>, vector<1x8x128xf32>
      tpu.vector_store %arg5[%c0_35, %c0_36, %c0_37], %70 {strides = array<i32>} : memref<1x8x128xf32, #tpu.memory_space<vmem>>, vector<1x8x128xf32>,
    } else {
    }
    return
  }
  func.func @transform_0(%arg0: i32, %arg1: i32) -> (i32, i32) {
    %c1_i32 = arith.constant 1 : i32
    %0 = arith.muli %arg0, %c1_i32 : i32
    %1 = arith.addi %0, %arg1 : i32
    %c1_i32_0 = arith.constant 1 : i32
    %2 = arith.minsi %1, %c1_i32_0 : i32
    %c0_i32 = arith.constant 0 : i32
    %c0_i32_1 = arith.constant 0 : i32
    return %2, %c0_i32 : i32, i32
  }
  func.func @transform_1(%arg0: i32, %arg1: i32) -> (i32, i32) {
    %c1_i32 = arith.constant 1 : i32
    %0 = arith.muli %arg0, %c1_i32 : i32
    %1 = arith.addi %0, %arg1 : i32
    %c0_i32 = arith.constant 0 : i32
    %c0_i32_0 = arith.constant 0 : i32
    return %1, %c0_i32 : i32, i32
  }
  func.func @transform_2(%arg0: i32, %arg1: i32) -> (i32, i32, i32) {
    %c0_i32 = arith.constant 0 : i32
    %c0_i32_0 = arith.constant 0 : i32
    %c0_i32_1 = arith.constant 0 : i32
    return %arg0, %c0_i32, %c0_i32_0 : i32, i32, i32
  }
  func.func @transform_3(%arg0: i32, %arg1: i32) -> (i32, i32, i32) {
    %c0_i32 = arith.constant 0 : i32
    %c0_i32_0 = arith.constant 0 : i32
    %c0_i32_1 = arith.constant 0 : i32
    return %arg0, %c0_i32, %c0_i32_0 : i32, i32, i32
  }
}

</mosaic_0001>

<llo_original>
// kernel: tpu_custom_call.1
$region0: #{tpu_custom_call.1}
  #allocation0 [shape = 'u32[]', space=smem, size = 0x4, offset = 0x4, fixed_abs, tag = 'smem constant byte address 0x4 - core index']
  #allocation1 [shape = 'u32[72,128]{1,0:T(1,128)}', space=vmem, size = 0x9000, scoped, tag = 'internal scratch']
  #allocation2 [shape = 'f32[8,1]{1,0:T(8,128)}', space=vmem, size = 0x1000, scoped, tag = 'scratch operand']
  #allocation3 [shape = 'f32[8,1]{1,0:T(8,128)}', space=vmem, size = 0x1000, scoped, tag = 'scratch operand']
  %s0 = inlined_call_operand.vmem [shape: f32[16,128], index: 0, kind: input, shape index: {}]
  %s1 = inlined_call_operand.vmem [shape: s32[16,1], index: 1, kind: input, shape index: {}]
  %s2 = inlined_call_operand.hbm [shape: f32[2,8,128], index: 2, kind: output, shape index: {0}]
  %s3 = inlined_call_operand.hbm [shape: f32[2,8,128], index: 3, kind: output, shape index: {1}]
  %4 = xla_tuple %s2, %s3
  %s5 = sld [smem:[#allocation0]]
  $region57: #{tpu_custom_call.1} parent=0
    _
  %s7 = ssub.s32 1, %s5
  %s8 = scalar_select 0, %s7, %s5
  $region1: #{tpu_custom_call.1} parent=0
    #allocation4 [shape = 'u8[8192]{0}', space=vmem, size = 0x2000, scoped, tag = 'output window, operand 0']
    #allocation5 [shape = 's32[2]{0}', space=sflag, size = 0x8, scoped, tag = 'scoped memory for tpu_custom_call.1']
    #allocation6 [shape = 'u8[8192]{0}', space=vmem, size = 0x2000, scoped, tag = 'output window, operand 1']
    #allocation7 [shape = 's32[2]{0}', space=sflag, size = 0x8, scoped, tag = 'scoped memory for tpu_custom_call.1']
    %9 = vsyncpa [#allocation5], 0
    %s10 = scalar_lea.sflag [#allocation5], 1
    %11 = vsyncpa %s10, 0
    %12 = vsyncpa [#allocation7], 0
    %s13 = scalar_lea.sflag [#allocation7], 1
    %14 = vsyncpa %s13, 0
    loop: start=0, step=1, limit=4
    $region2: #{tpu_custom_call.1} parent=1 // loop_pre_header
      _
    $region3: #{tpu_custom_call.1} parent=1 // loop_header
      %s16 = sphi 0, %s20
      %p17 = scmp.ge.s32.totalorder %s16, 4
      %s23 = sphi 0, %s35
      %s24 = sphi 0, %s31
      %s25 = sphi 0, %s23
      %s26 = sphi 0, %s24
      %s27 = sphi 0, %s25
      %s28 = sphi 0, %s26
      %s44 = sphi 0, %s46
      %s47 = sphi 0, %s44
      %s48 = sphi 0, %s47
      %s64 = sphi 0, %s48
      %s72 = sphi 0, %s74
      %s75 = sphi 0, %s72
      %s76 = sphi 0, %s75
      %s92 = sphi 0, %s76
      %s98 = sphi 0, %s100
      %s101 = sphi 0, %s98
      %s102 = sphi 0, %s101
      %s118 = sphi 0, %s102
      %s124 = sphi 0, %s126
      %s127 = sphi 0, %s124
      %s128 = sphi 0, %s127
      %s144 = sphi 0, %s128
    $region4: #{tpu_custom_call.1} parent=1 // loop_header_branch
      %19 = sbr.rel (%p17) target = $region8
    $region5: #{tpu_custom_call.1} parent=1 // loop_body
      %s21 = ssub.s32 %s16, 1
      %s22 = ssub.s32 %s16, 2
      %s29 = sadd.s32 1, %s24
      %p30 = scmp.ge.s32.totalorder %s29, 1
      %s31 = scalar_select %p30, 0, %s29
      %s32 = sadd.s32 1, %s23
      %s33 = scalar_select %p30, %s32, %s23
      %p34 = scmp.ge.s32.totalorder %s33, 2
      %s35 = scalar_select %p34, 0, %s33
      %s36 = sadd.s32 %s23, %s24
      %p37 = scmp.lt.s32.totalorder %s36, 1
      %s38 = scalar_select %p37, %s36, 1
      %s39 = sadd.s32 %s35, %s31
      %p40 = scmp.lt.s32.totalorder %s39, 1
      %s41 = scalar_select %p40, %s39, 1
      %s42 = ssub.s32 %s38, %s41
      %p43 = scmp.eq.s32.totalorder %s42, 0
      %s45 = sadd.s32 %s44, 1
      %s46 = scalar_select %p43, %s44, %s45
      %p49 = pneg %p43
      %p50 = scmp.eq.s32.totalorder %s16, 1
      %p51 = por %p49, %p50
      %p52 = scmp.ne.s32.totalorder %s44, %s47
      %p53 = scmp.eq.s32.totalorder %s16, 0
      %p54 = por %p52, %p53
      %p55 = scmp.ne.s32.totalorder %s44, %s47
      %p56 = scmp.eq.s32.totalorder %s21, 1
      %p57 = por %p55, %p56
      %p58 = scmp.ne.s32.totalorder %s47, %s48
      %p59 = scmp.eq.s32.totalorder %s21, 0
      %p60 = por %p58, %p59
      %p61 = scmp.ne.s32.totalorder %s47, %s48
      %p62 = scmp.eq.s32.totalorder %s22, 1
      %p63 = por %p61, %p62
      %p65 = scmp.ne.s32.totalorder %s48, %s64
      %p66 = scmp.eq.s32.totalorder %s22, 0
      %p67 = por %p65, %p66
      %s68 = sadd.s32 %s23, %s24
      %s69 = sadd.s32 %s35, %s31
      %s70 = ssub.s32 %s68, %s69
      %p71 = scmp.eq.s32.totalorder %s70, 0
      %s73 = sadd.s32 %s72, 1
      %s74 = scalar_select %p71, %s72, %s73
      %p77 = pneg %p71
      %p78 = scmp.eq.s32.totalorder %s16, 1
      %p79 = por %p77, %p78
      %p80 = scmp.ne.s32.totalorder %s72, %s75
      %p81 = scmp.eq.s32.totalorder %s16, 0
      %p82 = por %p80, %p81
      %p83 = scmp.ne.s32.totalorder %s72, %s75
      %p84 = scmp.eq.s32.totalorder %s21, 1
      %p85 = por %p83, %p84
      %p86 = scmp.ne.s32.totalorder %s75, %s76
      %p87 = scmp.eq.s32.totalorder %s21, 0
      %p88 = por %p86, %p87
      %p89 = scmp.ne.s32.totalorder %s75, %s76
      %p90 = scmp.eq.s32.totalorder %s22, 1
      %p91 = por %p89, %p90
      %p93 = scmp.ne.s32.totalorder %s76, %s92
      %p94 = scmp.eq.s32.totalorder %s22, 0
      %p95 = por %p93, %p94
      %s96 = ssub.s32 %s23, %s35
      %p97 = scmp.eq.s32.totalorder %s96, 0
      %s99 = sadd.s32 %s98, 1
      %s100 = scalar_select %p97, %s98, %s99
      %p103 = pneg %p97
      %p104 = scmp.eq.s32.totalorder %s16, 1
      %p105 = por %p103, %p104
      %p106 = scmp.ne.s32.totalorder %s98, %s101
      %p107 = scmp.eq.s32.totalorder %s16, 0
      %p108 = por %p106, %p107
      %p109 = scmp.ne.s32.totalorder %s98, %s101
      %p110 = scmp.eq.s32.totalorder %s21, 1
      %p111 = por %p109, %p110
      %p112 = scmp.ne.s32.totalorder %s101, %s102
      %p113 = scmp.eq.s32.totalorder %s21, 0
      %p114 = por %p112, %p113
      %p115 = scmp.ne.s32.totalorder %s101, %s102
      %p116 = scmp.eq.s32.totalorder %s22, 1
      %p117 = por %p115, %p116
      %p119 = scmp.ne.s32.totalorder %s102, %s118
      %p120 = scmp.eq.s32.totalorder %s22, 0
      %p121 = por %p119, %p120
      %s122 = ssub.s32 %s23, %s35
      %p123 = scmp.eq.s32.totalorder %s122, 0
      %s125 = sadd.s32 %s124, 1
      %s126 = scalar_select %p123, %s124, %s125
      %p129 = pneg %p123
      %p130 = scmp.eq.s32.totalorder %s16, 1
      %p131 = por %p129, %p130
      %p132 = scmp.ne.s32.totalorder %s124, %s127
      %p133 = scmp.eq.s32.totalorder %s16, 0
      %p134 = por %p132, %p133
      %p135 = scmp.ne.s32.totalorder %s124, %s127
      %p136 = scmp.eq.s32.totalorder %s21, 1
      %p137 = por %p135, %p136
      %p138 = scmp.ne.s32.totalorder %s127, %s128
      %p139 = scmp.eq.s32.totalorder %s21, 0
      %p140 = por %p138, %p139
      %p141 = scmp.ne.s32.totalorder %s127, %s128
      %p142 = scmp.eq.s32.totalorder %s22, 1
      %p143 = por %p141, %p142
      %p145 = scmp.ne.s32.totalorder %s128, %s144
      %p146 = scmp.eq.s32.totalorder %s22, 0
      %p147 = por %p145, %p146
      %p148 = scmp.le.s32.totalorder 1, %s16
      %p149 = scmp.lt.s32.totalorder %s16, 3
      %p150 = pnand %p148, %p149
      %p151 = pneg %p150
      // Predicated region
      $region9: #{tpu_custom_call.1} parent=5 // pred_check
        _
      $region10: #{tpu_custom_call.1} parent=5 // pred_check_branch
        %153 = sbr.rel (%p150) target = $region12
      $region11: #{tpu_custom_call.1} parent=5 // pred_region
        %s154 = ssub.s32 %s16, 1
      $region12: #{tpu_custom_call.1} parent=5 // pred_fallthru
        _
      %p155 = scmp.lt.s32.totalorder %s16, 2
      // Predicated region
      $region13: #{tpu_custom_call.1} parent=5 // pred_check
        %p156 = pneg %p155
      $region14: #{tpu_custom_call.1} parent=5 // pred_check_branch
        %158 = sbr.rel (%p156) target = $region16
      $region15: #{tpu_custom_call.1} parent=5 // pred_region
        // Predicated region
        $region17: #{tpu_custom_call.1} parent=15 // pred_check
          %p159 = pneg %p54
        $region18: #{tpu_custom_call.1} parent=15 // pred_check_branch
          %161 = sbr.rel (%p159) target = $region20
        $region19: #{tpu_custom_call.1} parent=15 // pred_region
          %s162 = sadd.s32 %s23, %s24
          %p163 = scmp.lt.s32.totalorder %s162, 1
          %s164 = scalar_select %p163, %s162, 1
          %p165 = scmp.lt.s32.totalorder %s164, 1
          %s166 = scalar_select %p165, %s164, 1
          %s167 = smul.addr %s166, 8
          %s168 = scalar_lea.vmem %s0, %s167
          %s169 = sadd.s32 %s23, %s24
          %p170 = scmp.lt.s32.totalorder %s169, 1
          %s171 = scalar_select %p170, %s169, 1
        $region20: #{tpu_custom_call.1} parent=15 // pred_fallthru
          _
        // Predicated region
        $region21: #{tpu_custom_call.1} parent=15 // pred_check
          %p172 = pneg %p82
        $region22: #{tpu_custom_call.1} parent=15 // pred_check_branch
          %174 = sbr.rel (%p172) target = $region24
        $region23: #{tpu_custom_call.1} parent=15 // pred_region
          %s175 = sadd.s32 %s23, %s24
          %p176 = scmp.lt.s32.totalorder %s175, 1
          %s177 = scalar_select %p176, %s175, 1
          %s178 = smul.addr %s177, 8
          %s179 = scalar_lea.vmem %s1, %s178
          %s180 = sadd.s32 %s23, %s24
        $region24: #{tpu_custom_call.1} parent=15 // pred_fallthru
          _
      $region16: #{tpu_custom_call.1} parent=5 // pred_fallthru
        _
      %p181 = scmp.le.s32.totalorder 1, %s16
      %p182 = scmp.lt.s32.totalorder %s16, 3
      %p183 = pnand %p181, %p182
      %p184 = pneg %p183
      // Predicated region
      $region25: #{tpu_custom_call.1} parent=5 // pred_check
        _
      $region26: #{tpu_custom_call.1} parent=5 // pred_check_branch
        %186 = sbr.rel (%p183) target = $region28
      $region27: #{tpu_custom_call.1} parent=5 // pred_region
        %s187 = ssub.s32 %s16, 1
        %s188 = sadd.s32 %s25, %s26
        %p189 = scmp.lt.s32.totalorder %s188, 1
        %s190 = scalar_select %p189, %s188, 1
        %p191 = scmp.lt.s32.totalorder %s190, 1
        %s192 = scalar_select %p191, %s190, 1
        %s193 = smul.addr %s192, 8
        %s194 = scalar_lea.vmem %s0, %s193
        %p195 = pneg %p60
        %p196 = pneg %p57
        %s197 = sadd.s32 %s25, %s26
        %p198 = scmp.lt.s32.totalorder %s197, 1
        %s199 = scalar_select %p198, %s197, 1
        %s200 = smul.addr %s199, 8
        %s201 = scalar_lea.vmem %s1, %s200
        %p202 = pneg %p88
        %p203 = pneg %p85
        %p204 = pneg %p114
        %p205 = pneg %p111
        %s206 = sand.u32 %s101, 1
        %s207 = scalar_lea.sflag [#allocation5], %s206
        %s208 = sand.u32 %s101, 1
        %s209 = smul.addr %s208, 8
        %s210 = scalar_lea.vmem [#allocation4], %s209
        %p211 = pneg %p140
        %p212 = pneg %p137
        %s213 = sand.u32 %s127, 1
        %s214 = scalar_lea.sflag [#allocation7], %s213
        %s215 = sand.u32 %s127, 1
        %s216 = smul.addr %s215, 8
        %s217 = scalar_lea.vmem [#allocation6], %s216
        %s218 = sadd.s32 %s25, %s26
        %p219 = scmp.lt.s32.totalorder %s218, 1
        %s220 = scalar_select %p219, %s218, 1
        %p221 = scmp.lt.s32.totalorder %s220, 1
        %s222 = scalar_select %p221, %s220, 1
        %s223 = smul.addr %s222, 8
        %s224 = scalar_lea.vmem %s0, %s223
        %s225 = sadd.s32 %s25, %s26
        %p226 = scmp.lt.s32.totalorder %s225, 1
        %s227 = scalar_select %p226, %s225, 1
        %s228 = sadd.s32 %s25, %s26
        %p229 = scmp.lt.s32.totalorder %s228, 1
        %s230 = scalar_select %p229, %s228, 1
        %s231 = smul.addr %s230, 8
        %s232 = scalar_lea.vmem %s1, %s231
        %s233 = sadd.s32 %s25, %s26
        %p234 = scmp.eq.s32.totalorder %s26, 0
        // Predicated region
        $region29: #{tpu_custom_call.1} parent=27 // pred_check
          %p235 = pneg %p234
        $region30: #{tpu_custom_call.1} parent=27 // pred_check_branch
          %237 = sbr.rel (%p235) target = $region32
        $region31: #{tpu_custom_call.1} parent=27 // pred_region
          %vm238 = vcmask 7168
          %239 = vst.msk [vmem:[#allocation2] sm:$0xff] %vm238, 0.0
          %240 = vst.msk [vmem:[#allocation3] sm:$0xff] %vm238, 0.0
        $region32: #{tpu_custom_call.1} parent=27 // pred_fallthru
          _
        %v241 = vld [vmem:[%s224] sm:$0xff]
        %v242 = vld [vmem:[%s232] sm:$0xff]
        %243 = vmax.xlane.f32.xlu0 %v241
        %v244 = vpop.xlane.xlu0 %243
        %v245 = vsub.f32 %v241, %v244
        %v246 = vmul.f32 %v245, 1.442695
        %v247 = vpow.pop %v246
        %248 = vadd.xlane.f32.xlu0 %v247
        %v249 = vpop.xlane.xlu0 %248
        %v250 = vlog2.pop %v249
        %v251 = vmul.f32 %v250, 0.6931472
        %v252 = vadd.f32 %v244, %v251
        %v253 = vsub.f32 %v241, %v252
        %v254 = vlaneseq
        %v255 = vand.u32 %v254, 127
        %256 = vset.pattern.permute.xlu0 0
        %257 = vperm.xlu0 %256, %v242
        %v258 = vpop.permute.xlu0 %257
        %vm259 = vcmp.eq.s32.totalorder %v255, %v258
        %vm260 = vcmp.eq.s32.totalorder %v255, 28
        %v261 = vsel %vm259, %v253, 0.0
        %262 = vadd.xlane.f32.xlu0 %v261
        %v263 = vpop.xlane.xlu0 %262
        %vm264 = vmor %vm259, %vm260
        %v265 = vsel %vm264, 0.0, %v253
        %266 = vadd.xlane.f32.xlu0 %v265
        %v267 = vpop.xlane.xlu0 %266
        %vm268 = vcmp.eq.s32.totalorder %v242, 28
        %vm269 = vcmp.ne.s32.totalorder %v242, 4294967196
        %v270 = vmul.f32 %v263, 0.9
        %v271 = vsub.f32 -0.8087112, %v270
        %v272 = vmul.f32 %v267, 0.0007936508
        %v273 = vsub.f32 %v271, %v272
        %v274 = vsel %vm268, -0.0056657675, 0.0
        %v275 = vadd.f32 %v273, %v274
        %v276 = vsel %vm269, %v275, 0.0
        %v277 = vld [vmem:[#allocation2] sm:$0xff]
        %v278 = vadd.f32 %v277, %v276
        %vm279 = vcmask 7168
        %280 = vst.msk [vmem:[#allocation2] sm:$0xff] %vm279, %v278
        %v281 = vld [vmem:[#allocation3] sm:$0xff]
        %v282 = vsel %vm269, 1, 0
        %v283 = vcvt.s32.f32 %v282
        %v284 = vadd.f32 %v281, %v283
        %285 = vst.msk [vmem:[#allocation3] sm:$0xff] %vm279, %v284
        // Predicated region
        $region33: #{tpu_custom_call.1} parent=27 // pred_check
          %p286 = pneg %p234
        $region34: #{tpu_custom_call.1} parent=27 // pred_check_branch
          %288 = sbr.rel (%p286) target = $region36
        $region35: #{tpu_custom_call.1} parent=27 // pred_region
          %v289 = vld [vmem:[#allocation2] sm:$0xff]
          %v290 = vsel %vm279, %v289, 0.0
          %291 = vadd.xlane.f32.xlu0 %v290
          %v292 = vpop.xlane.xlu0 %291
          %v293 = vrot.slane %v292, 4
          %v294 = vadd.f32 %v292, %v293
          %v295 = vrot.slane %v294, 2
          %v296 = vadd.f32 %v294, %v295
          %v297 = vrot.slane %v296, 1
          %v298 = vadd.f32 %v296, %v297
          %s299 = vtos %v298
          %v300 = vstv %s299
          %301 = vst [vmem:[%s210] sm:$0xff] %v300
          %v302 = vld [vmem:[#allocation3] sm:$0xff]
          %v303 = vsel %vm279, %v302, 0.0
          %304 = vadd.xlane.f32.xlu0 %v303
          %v305 = vpop.xlane.xlu0 %304
          %v306 = vrot.slane %v305, 4
          %v307 = vadd.f32 %v305, %v306
          %v308 = vrot.slane %v307, 2
          %v309 = vadd.f32 %v307, %v308
          %v310 = vrot.slane %v309, 1
          %v311 = vadd.f32 %v309, %v310
          %s312 = vtos %v311
          %v313 = vstv %s312
          %314 = vst [vmem:[%s217] sm:$0xff] %v313
        $region36: #{tpu_custom_call.1} parent=27 // pred_fallthru
          _
        %s315 = sand.u32 %s101, 1
        %s316 = scalar_lea.sflag [#allocation5], %s315
        %s317 = sand.u32 %s101, 1
        %s318 = smul.addr %s317, 8
        %s319 = scalar_lea.vmem [#allocation4], %s318
        %s320 = sand.u32 %s127, 1
        %s321 = scalar_lea.sflag [#allocation7], %s320
        %s322 = sand.u32 %s127, 1
        %s323 = smul.addr %s322, 8
        %s324 = scalar_lea.vmem [#allocation6], %s323
        // Predicated region
        $region37: #{tpu_custom_call.1} parent=27 // pred_check
          %p325 = pneg %p111
        $region38: #{tpu_custom_call.1} parent=27 // pred_check_branch
          %327 = sbr.rel (%p325) target = $region40
        $region39: #{tpu_custom_call.1} parent=27 // pred_region
          %329 = vsyncadd %s316, 0
          %s330 = smul.addr %s25, 8
          %s331 = scalar_lea.hbm %s2, %s330
          %s333 = sshll.u32 %s319, 4
          %s334 = int_to_ptr.vmem [resolvable:$true] %s333
          %s335 = sshll.u32 %s331, 4
          %s336 = int_to_ptr.hbm [resolvable:$true] %s335
          %338 = dma.vmem_to_hbm [thread:$0]  %s334, 128, %s336, %s316
        $region40: #{tpu_custom_call.1} parent=27 // pred_fallthru
          _
        // Predicated region
        $region41: #{tpu_custom_call.1} parent=27 // pred_check
          %p339 = pneg %p137
        $region42: #{tpu_custom_call.1} parent=27 // pred_check_branch
          %341 = sbr.rel (%p339) target = $region44
        $region43: #{tpu_custom_call.1} parent=27 // pred_region
          %343 = vsyncadd %s321, 0
          %s344 = smul.addr %s25, 8
          %s345 = scalar_lea.hbm %s3, %s344
          %s347 = sshll.u32 %s324, 4
          %s348 = int_to_ptr.vmem [resolvable:$true] %s347
          %s349 = sshll.u32 %s345, 4
          %s350 = int_to_ptr.hbm [resolvable:$true] %s349
          %352 = dma.vmem_to_hbm [thread:$0]  %s348, 128, %s350, %s321
        $region44: #{tpu_custom_call.1} parent=27 // pred_fallthru
          _
      $region28: #{tpu_custom_call.1} parent=5 // pred_fallthru
        _
      %p353 = scmp.le.s32.totalorder 2, %s16
      // Predicated region
      $region45: #{tpu_custom_call.1} parent=5 // pred_check
        %p354 = pneg %p353
      $region46: #{tpu_custom_call.1} parent=5 // pred_check_branch
        %356 = sbr.rel (%p354) target = $region48
      $region47: #{tpu_custom_call.1} parent=5 // pred_region
        %s357 = ssub.s32 %s16, 2
        // Predicated region
        $region49: #{tpu_custom_call.1} parent=47 // pred_check
          %p358 = pneg %p117
        $region50: #{tpu_custom_call.1} parent=47 // pred_check_branch
          %360 = sbr.rel (%p358) target = $region52
        $region51: #{tpu_custom_call.1} parent=47 // pred_region
          %s361 = sand.u32 %s102, 1
          %s362 = scalar_lea.sflag [#allocation5], %s361
          %s363 = sand.u32 %s102, 1
          %s364 = smul.addr %s363, 8
          %s365 = scalar_lea.vmem [#allocation4], %s364
          %367 = dma.done %s362, 128
        $region52: #{tpu_custom_call.1} parent=47 // pred_fallthru
          _
        // Predicated region
        $region53: #{tpu_custom_call.1} parent=47 // pred_check
          %p368 = pneg %p143
        $region54: #{tpu_custom_call.1} parent=47 // pred_check_branch
          %370 = sbr.rel (%p368) target = $region56
        $region55: #{tpu_custom_call.1} parent=47 // pred_region
          %s371 = sand.u32 %s128, 1
          %s372 = scalar_lea.sflag [#allocation7], %s371
          %s373 = sand.u32 %s128, 1
          %s374 = smul.addr %s373, 8
          %s375 = scalar_lea.vmem [#allocation6], %s374
          %377 = dma.done %s372, 128
        $region56: #{tpu_custom_call.1} parent=47 // pred_fallthru
          _
      $region48: #{tpu_custom_call.1} parent=5 // pred_fallthru
        _
    $region6: #{tpu_custom_call.1} parent=1 // loop_footer
      %s20 = sadd.s32 1, %s16
    $region7: #{tpu_custom_call.1} parent=1 // loop_footer_branch
      %15 = sbr.rel target = $region3
    $region8: #{tpu_custom_call.1} parent=1 // loop_exit
      _
    %378 = vsyncpa [#allocation5], 1
    %s379 = scalar_lea.sflag [#allocation5], 1
    %380 = vsyncpa %s379, 1
    %381 = vsyncpa [#allocation7], 1
    %s382 = scalar_lea.sflag [#allocation7], 1
    %383 = vsyncpa %s382, 1

</llo_original>
